<compile_context>
chip_gen: v7x
topology: tpu7x:2x2x1
jax: 0.10.0
libtpu: 0.0.40
codegen_flags: <defaults>
</compile_context>

<pallas_src>
import math

import numpy as np

import jax
import jax.numpy as jnp
from jax.experimental import pallas as pl
from jax.experimental.pallas import tpu as pltpu

SHIFT = math.log(2.0)

# Edge-stream dtype for the scatter operand.  bf16 halves HBM traffic (the
# one-hot is exact in bf16 and accumulation stays f32); set to jnp.float32 to
# recover bit-faithful PyTorch f32 semantics at ~2x edge-stream DMA cost.
EDGE_STREAM_DTYPE = jnp.bfloat16


def _round_up(x, m):
    return ((x + m - 1) // m) * m


def _make_kernel(has_lin1):
    """Kernel factory; has_lin1=False when lin1 was folded into the edge stream."""

    def kernel(*refs):
        if has_lin1:
            (sched_ref, cnt_ref, idx_ref, e_ref, v_ref,
             w1_ref, b1_ref, w2_ref, b2_ref, out_ref, acc_ref) = refs
        else:
            (sched_ref, cnt_ref, idx_ref, e_ref, v_ref,
             b1_ref, w2_ref, b2_ref, out_ref, acc_ref) = refs
            w1_ref = None
        del sched_ref  # only consumed by the index_maps

        i = pl.program_id(0)
        k = pl.program_id(1)
        tn = acc_ref.shape[0]
        te = e_ref.shape[0]

        @pl.when(k == 0)
        def _():
            acc_ref[...] = jnp.zeros_like(acc_ref)

        # Accumulate only the edge tiles that belong to this node tile.
        @pl.when(k < cnt_ref[i])
        def _():
            # (1, TE) relative targets; out-of-tile / padded edges never match.
            idx_rel = idx_ref[...] - i * tn
            row = jax.lax.broadcasted_iota(jnp.int32, (tn, te), 0)
            onehot = (row == idx_rel).astype(e_ref.dtype)     # exact 0/1
            acc_ref[...] += jnp.dot(onehot, e_ref[...],
                                    preferred_element_type=jnp.float32)

        # Epilogue once per node tile: lin1 (unless folded) + shifted softplus
        # + lin2 + residual.
        @pl.when(k == pl.num_programs(1) - 1)
        def _():
            h = acc_ref[...]
            if has_lin1:
                h = jnp.dot(h, w1_ref[...], preferred_element_type=jnp.float32)
            h = h + b1_ref[...]
            sp = jnp.maximum(h, 0.0) + jnp.log1p(jnp.exp(-jnp.abs(h)))  # stable softplus
            h2 = jnp.dot(sp - SHIFT, w2_ref[...],
                         preferred_element_type=jnp.float32) + b2_ref[...]
            out_ref[...] = v_ref[...] + h2

    return kernel


def _pad2d(x, rows, cols, dtype):
    """Zero-pad/cast x to (rows, cols); pass-through when already aligned."""
    x = x.astype(dtype)
    if x.shape == (rows, cols):
        return x
    return jnp.zeros((rows, cols), dtype).at[: x.shape[0], : x.shape[1]].set(x)


def update_v_pallas(v, e, edge_index, w1, b1, w2, b2, *, tn=512, te=2048):
    """v: (N, H) f32, e: (E, F) f32, edge_index: (2, E) int.

    Linear weights stored as (in, out); biases as (out,).
    tn/te are node / edge tile sizes (clamped & re-aligned: TN->mult of 8,
    TE->mult of 128).  Per-chip tuning: v6e tn 512-1024 / te 2048;
    v7x tn 512 / te 1024-2048 (cap TN*TE: one-hot temporaries ~10B/elem vs
    64 MiB physical VMEM); v5e tn 512 / te 1024.

    Note: the CSR tile schedule is built on the host from concrete
    edge_index values, so call this wrapper eagerly (outside jit).
    """
    N, H = v.shape
    E, F = e.shape
    # scatter(e) @ W1 == scatter(e @ W1): fold lin1 when it narrows the stream.
    fold_lin1 = F > H
    D = H if fold_lin1 else F          # width of the scattered edge-feature stream

    # lane-dense padding for contraction / output dims
    H_pad = _round_up(max(H, 128), 128)
    D_pad = _round_up(max(D, 128), 128)

    # --- tile sizes: clamp to problem size, re-align to hardware tiling ---
    TN = max(8, _round_up(min(tn, _round_up(N, 8)), 8))
    # v7x megacore: keep >= 2 node tiles so the "parallel" axis spans both TCs.
    if N > 8 and _round_up(N, TN) // TN < 2:
        TN = max(8, _round_up(_round_up(N, 8) // 2, 8))
    N_pad = _round_up(N, TN)

    TE = max(128, _round_up(min(te, _round_up(max(E, 1), 128)), 128))
    E_pad = _round_up(max(E, 1), TE)

    num_node_tiles = N_pad // TN
    num_edge_tiles = E_pad // TE

    # --- host-side CSR schedule: sort edges by target, per-node-tile edge-tile
    # offsets & counts (boundary tiles are filtered in-kernel by the one-hot) ---
    tgt_np = np.asarray(jax.device_get(edge_index))[1].astype(np.int64)
    order = np.argsort(tgt_np, kind="stable")
    tgt_sorted = tgt_np[order]

    bounds = np.arange(num_node_tiles + 1, dtype=np.int64) * TN
    starts = np.searchsorted(tgt_sorted, bounds[:-1], side="left")
    ends = np.searchsorted(tgt_sorted, bounds[1:], side="left")
    tile_lo = starts // TE
    tile_hi = -(-ends // TE)                              # ceil-div
    cnt_np = np.maximum(tile_hi - tile_lo, 0)
    k_steps = max(int(cnt_np.max()), 1)

    kk = np.arange(k_steps, dtype=np.int64)[None, :]
    sched_np = tile_lo[:, None] + np.minimum(kk, np.maximum(cnt_np[:, None] - 1, 0))
    sched_np = np.clip(sched_np, 0, num_edge_tiles - 1)   # always a valid block

    sched = jnp.asarray(sched_np.reshape(-1).astype(np.int32))  # 1-D: cheap SMEM pad
    cnt = jnp.asarray(cnt_np.astype(np.int32))

    # --- operand padding / layout (pass-through when already aligned) ---
    f32 = jnp.float32
    feat = jnp.dot(e.astype(f32), w1.astype(f32)) if fold_lin1 else e
    feat = jnp.take(feat, jnp.asarray(order, dtype=jnp.int32), axis=0)
    feat_p = _pad2d(feat, E_pad, D_pad, EDGE_STREAM_DTYPE)
    v_p = _pad2d(v, N_pad, H_pad, f32)

    # Padded edges carry target N_pad -> never match any node row of the one-hot.
    idx_np = np.full((1, E_pad), N_pad, np.int32)
    idx_np[0, :E] = tgt_sorted.astype(np.int32)
    idx = jnp.asarray(idx_np)

    b1_p = _pad2d(b1.reshape(1, -1), 1, H_pad, f32)
    w2_p = _pad2d(w2, H_pad, H_pad, f32)
    b2_p = _pad2d(b2.reshape(1, -1), 1, H_pad, f32)

    # --- specs; index_maps take (i, k, sched_ref, cnt_ref) with scalar prefetch ---
    # idx's 8-sublane pad adds ~12% to the edge-stream bytes; accepted for
    # schedule simplicity (see TODO at top of file).
    in_specs = [
        pl.BlockSpec((1, TE), lambda i, k, s, c: (0, s[i * k_steps + k])),      # idx
        pl.BlockSpec((TE, D_pad), lambda i, k, s, c: (s[i * k_steps + k], 0)),  # e
        pl.BlockSpec((TN, H_pad), lambda i, k, s, c: (i, 0)),                   # v
    ]
    operands = [idx, feat_p, v_p]
    if not fold_lin1:
        w1_p = _pad2d(w1, D_pad, H_pad, f32)
        in_specs.append(pl.BlockSpec((D_pad, H_pad), lambda i, k, s, c: (0, 0)))
        operands.append(w1_p)
    in_specs += [
        pl.BlockSpec((1, H_pad), lambda i, k, s, c: (0, 0)),                    # b1
        pl.BlockSpec((H_pad, H_pad), lambda i, k, s, c: (0, 0)),                # w2
        pl.BlockSpec((1, H_pad), lambda i, k, s, c: (0, 0)),                    # b2
    ]
    operands += [b1_p, w2_p, b2_p]

    out_p = pl.pallas_call(
        _make_kernel(has_lin1=not fold_lin1),
        out_shape=jax.ShapeDtypeStruct((N_pad, H_pad), f32),
        grid_spec=pltpu.PrefetchScalarGridSpec(
            num_scalar_prefetch=2,
            grid=(num_node_tiles, k_steps),
            in_specs=in_specs,
            out_specs=pl.BlockSpec((TN, H_pad), lambda i, k, s, c: (i, 0)),
            scratch_shapes=[pltpu.VMEM((TN, D_pad), jnp.float32)],
        ),
        compiler_params=pltpu.CompilerParams(
            dimension_semantics=("parallel", "arbitrary"),
            # ~8-12 MiB used at the defaults; headroom for bigger tn/te sweeps
            # while staying under v7x's 64 MiB physical VMEM.
            vmem_limit_bytes=48 * 1024 * 1024,
        ),
    )(sched, cnt, *operands)

    return out_p[:N, :H]


def _xavier_uniform(key, fan_in, fan_out):
    bound = math.sqrt(6.0 / (fan_in + fan_out))
    return jax.random.uniform(key, (fan_in, fan_out), jnp.float32, -bound, bound)


def _reference(v, e, tgt, w1, b1, w2, b2):
    """Pure-JAX reference mirroring the kernel's edge-stream rounding."""
    N, H = v.shape
    F = e.shape[1]
    if F > H:   # kernel folds lin1 into the edge stream
        feat = (e @ w1).astype(EDGE_STREAM_DTYPE).astype(jnp.float32)
        out = jax.ops.segment_sum(feat, tgt, num_segments=N) + b1
    else:
        feat = e.astype(EDGE_STREAM_DTYPE).astype(jnp.float32)
        out = jax.ops.segment_sum(feat, tgt, num_segments=N) @ w1 + b1
    out = jax.nn.softplus(out) - SHIFT
    out = out @ w2 + b2
    return v + out


def _run_case(seed, num_nodes, num_edges, num_filters, hidden_channels):
    key = jax.random.PRNGKey(seed)
    k_v, k_e, k_i, k_j, k_w1, k_w2 = jax.random.split(key, 6)

    v = jax.random.normal(k_v, (num_nodes, hidden_channels), jnp.float32)
    e = jax.random.normal(k_e, (num_edges, num_filters), jnp.float32)
    tgt = jax.random.randint(k_i, (num_edges,), 0, num_nodes, jnp.int32)
    src = jax.random.randint(k_j, (num_edges,), 0, num_nodes, jnp.int32)
    edge_index = jnp.stack([src, tgt], axis=0)

    # PyTorch Linear computes x @ W.T + b with W (out, in); we store W as (in, out).
    # Xavier-uniform is symmetric in fan_in/fan_out, so init directly at (in, out).
    w1 = _xavier_uniform(k_w1, num_filters, hidden_channels)
    b1 = jnp.zeros((hidden_channels,), jnp.float32)
    w2 = _xavier_uniform(k_w2, hidden_channels, hidden_channels)
    b2 = jnp.zeros((hidden_channels,), jnp.float32)

    out = update_v_pallas(v, e, edge_index, w1, b1, w2, b2)
    out = jax.block_until_ready(out)

    ref = _reference(v, e, tgt, w1, b1, w2, b2)
    assert out.shape == (num_nodes, hidden_channels)
    assert jnp.allclose(out, ref, atol=1e-2, rtol=1e-2), (
        f"mismatch vs reference (N={num_nodes}, E={num_edges}, "
        f"F={num_filters}, H={hidden_channels})")


if __name__ == "__main__":
    # F == H: lin1 applied in the kernel epilogue.
    _run_case(0, num_nodes=16, num_edges=64, num_filters=32, hidden_channels=32)
    # F > H: lin1 folded into the edge stream (narrower scatter path).
    _run_case(0, num_nodes=16, num_edges=64, num_filters=64, hidden_channels=32)
    print("KERNEL_OK")
</pallas_src>

<mosaic_0001>
module attributes {stable_mosaic.version = 11 : i64} {
  func.func @kernel(%arg0: i32, %arg1: i32, %arg2: memref<2xi32, #tpu.memory_space<smem>>, %arg3: memref<2xi32, #tpu.memory_space<smem>>, %arg4: memref<1x128xi32, #tpu.memory_space<vmem>>, %arg5: memref<128x128xbf16, #tpu.memory_space<vmem>>, %arg6: memref<8x128xf32, #tpu.memory_space<vmem>>, %arg7: memref<128x128xf32, #tpu.memory_space<vmem>>, %arg8: memref<1x128xf32, #tpu.memory_space<vmem>>, %arg9: memref<128x128xf32, #tpu.memory_space<vmem>>, %arg10: memref<1x128xf32, #tpu.memory_space<vmem>>, %arg11: memref<8x128xf32, #tpu.memory_space<vmem>>, %arg12: memref<8x128xf32, #tpu.memory_space<vmem>>) attributes {dimension_semantics = [#tpu.dimension_semantics<parallel>, #tpu.dimension_semantics<arbitrary>], iteration_bounds = array<i64: 2, 1>, scalar_prefetch = 2 : i64, scratch_operands = 1 : i64, tpu.core_type = #tpu.core_type<tc>, window_params = [{transform_indices = @transform_0, window_bounds = array<i64: 1, 128>}, {transform_indices = @transform_1, window_bounds = array<i64: 128, 128>}, {transform_indices = @transform_2, window_bounds = array<i64: 8, 128>}, {pipeline_mode = #tpu.pipeline_mode<synchronous>, transform_indices = @transform_3, window_bounds = array<i64: 128, 128>}, {pipeline_mode = #tpu.pipeline_mode<synchronous>, transform_indices = @transform_4, window_bounds = array<i64: 1, 128>}, {pipeline_mode = #tpu.pipeline_mode<synchronous>, transform_indices = @transform_5, window_bounds = array<i64: 128, 128>}, {pipeline_mode = #tpu.pipeline_mode<synchronous>, transform_indices = @transform_6, window_bounds = array<i64: 1, 128>}, {transform_indices = @transform_7, window_bounds = array<i64: 8, 128>}]} {
    %c0_i32 = arith.constant 0 : i32
    %0 = arith.cmpi eq, %arg1, %c0_i32 : i32
    %1 = arith.extui %0 : i1 to i32
    %c0_i32_0 = arith.constant 0 : i32
    %2 = arith.cmpi ne, %1, %c0_i32_0 : i32
    scf.if %2 {
      %cst = arith.constant 0.000000e+00 : f32
      %11 = vector.broadcast %cst : f32 to vector<8x128xf32>
      %c0 = arith.constant 0 : index
      %c0_4 = arith.constant 0 : index
      %12 = vector.load %arg12[%c0, %c0_4] : memref<8x128xf32, #tpu.memory_space<vmem>>, vector<8x128xf32>
      tpu.vector_store %arg12[%c0, %c0_4], %11 {strides = array<i32>} : memref<8x128xf32, #tpu.memory_space<vmem>>, vector<8x128xf32>,
    } else {
    }
    %3 = arith.index_cast %arg0 : i32 to index
    %4 = memref.load %arg3[%3] : memref<2xi32, #tpu.memory_space<smem>>
    %5 = arith.cmpi slt, %arg1, %4 : i32
    %6 = arith.extui %5 : i1 to i32
    %c0_i32_1 = arith.constant 0 : i32
    %7 = arith.cmpi ne, %6, %c0_i32_1 : i32
    scf.if %7 {
      %c0 = arith.constant 0 : index
      %c0_4 = arith.constant 0 : index
      %11 = vector.load %arg4[%c0, %c0_4] : memref<1x128xi32, #tpu.memory_space<vmem>>, vector<1x128xi32>
      %c8_i32 = arith.constant 8 : i32
      %12 = arith.muli %arg0, %c8_i32 : i32
      %13 = vector.broadcast %12 : i32 to vector<1x128xi32>
      %14 = arith.subi %11, %13 : vector<1x128xi32>
      %15 = tpu.iota {dimensions = array<i32: 0>} : vector<8x128xi32>
      %16 = vector.broadcast %14 : vector<1x128xi32> to vector<8x128xi32>
      %17 = arith.cmpi eq, %15, %16 : vector<8x128xi32>
      %18 = arith.extui %17 : vector<8x128xi1> to vector<8x128xi32>
      %19 = arith.sitofp %18 : vector<8x128xi32> to vector<8x128xf32>
      %20 = arith.truncf %19 : vector<8x128xf32> to vector<8x128xbf16>
      %c0_5 = arith.constant 0 : index
      %c0_6 = arith.constant 0 : index
      %21 = vector.load %arg12[%c0_5, %c0_6] : memref<8x128xf32, #tpu.memory_space<vmem>>, vector<8x128xf32>
      %c0_7 = arith.constant 0 : index
      %c0_8 = arith.constant 0 : index
      %22 = vector.load %arg5[%c0_7, %c0_8] : memref<128x128xbf16, #tpu.memory_space<vmem>>, vector<128x128xbf16>
      %cst = arith.constant dense<0.000000e+00> : vector<8x128xf32>
      %23 = tpu.matmul %20, %22, %cst {dimension_numbers = #tpu.dot_dimension_numbers<[1], [0], [0], [1], [0, 0, 1, 1], [], []>} : vector<8x128xbf16>, vector<128x128xbf16>, vector<8x128xf32> -> vector<8x128xf32>
      %24 = arith.addf %21, %23 : vector<8x128xf32>
      %c0_9 = arith.constant 0 : index
      %c0_10 = arith.constant 0 : index
      %25 = vector.load %arg12[%c0_9, %c0_10] : memref<8x128xf32, #tpu.memory_space<vmem>>, vector<8x128xf32>
      tpu.vector_store %arg12[%c0_9, %c0_10], %24 {strides = array<i32>} : memref<8x128xf32, #tpu.memory_space<vmem>>, vector<8x128xf32>,
    } else {
    }
    %c0_i32_2 = arith.constant 0 : i32
    %8 = arith.cmpi eq, %arg1, %c0_i32_2 : i32
    %9 = arith.extui %8 : i1 to i32
    %c0_i32_3 = arith.constant 0 : i32
    %10 = arith.cmpi ne, %9, %c0_i32_3 : i32
    scf.if %10 {
      %c0 = arith.constant 0 : index
      %c0_4 = arith.constant 0 : index
      %11 = vector.load %arg12[%c0, %c0_4] : memref<8x128xf32, #tpu.memory_space<vmem>>, vector<8x128xf32>
      %c0_5 = arith.constant 0 : index
      %c0_6 = arith.constant 0 : index
      %12 = vector.load %arg7[%c0_5, %c0_6] : memref<128x128xf32, #tpu.memory_space<vmem>>, vector<128x128xf32>
      %cst = arith.constant dense<0.000000e+00> : vector<8x128xf32>
      %13 = tpu.matmul %11, %12, %cst {dimension_numbers = #tpu.dot_dimension_numbers<[1], [0], [0], [1], [0, 0, 1, 1], [], []>} : vector<8x128xf32>, vector<128x128xf32>, vector<8x128xf32> -> vector<8x128xf32>
      %c0_7 = arith.constant 0 : index
      %c0_8 = arith.constant 0 : index
      %14 = vector.load %arg8[%c0_7, %c0_8] : memref<1x128xf32, #tpu.memory_space<vmem>>, vector<1x128xf32>
      %15 = vector.broadcast %14 : vector<1x128xf32> to vector<8x128xf32>
      %16 = arith.addf %13, %15 : vector<8x128xf32>
      %cst_9 = arith.constant 0.000000e+00 : f32
      %17 = vector.broadcast %cst_9 : f32 to vector<8x128xf32>
      %18 = arith.maximumf %16, %17 : vector<8x128xf32>
      %19 = math.absf %16 : vector<8x128xf32>
      %cst_10 = arith.constant 0.000000e+00 : f32
      %20 = vector.broadcast %cst_10 : f32 to vector<8x128xf32>
      %21 = arith.subf %20, %19 : vector<8x128xf32>
      %22 = math.exp %21 : vector<8x128xf32>
      %23 = math.log1p %22 : vector<8x128xf32>
      %24 = arith.addf %18, %23 : vector<8x128xf32>
      %cst_11 = arith.constant 0.693147182 : f32
      %25 = vector.broadcast %cst_11 : f32 to vector<8x128xf32>
      %26 = arith.subf %24, %25 : vector<8x128xf32>
      %c0_12 = arith.constant 0 : index
      %c0_13 = arith.constant 0 : index
      %27 = vector.load %arg9[%c0_12, %c0_13] : memref<128x128xf32, #tpu.memory_space<vmem>>, vector<128x128xf32>
      %cst_14 = arith.constant dense<0.000000e+00> : vector<8x128xf32>
      %28 = tpu.matmul %26, %27, %cst_14 {dimension_numbers = #tpu.dot_dimension_numbers<[1], [0], [0], [1], [0, 0, 1, 1], [], []>} : vector<8x128xf32>, vector<128x128xf32>, vector<8x128xf32> -> vector<8x128xf32>
      %c0_15 = arith.constant 0 : index
      %c0_16 = arith.constant 0 : index
      %29 = vector.load %arg10[%c0_15, %c0_16] : memref<1x128xf32, #tpu.memory_space<vmem>>, vector<1x128xf32>
      %30 = vector.broadcast %29 : vector<1x128xf32> to vector<8x128xf32>
      %31 = arith.addf %28, %30 : vector<8x128xf32>
      %c0_17 = arith.constant 0 : index
      %c0_18 = arith.constant 0 : index
      %32 = vector.load %arg6[%c0_17, %c0_18] : memref<8x128xf32, #tpu.memory_space<vmem>>, vector<8x128xf32>
      %33 = arith.addf %32, %31 : vector<8x128xf32>
      %c0_19 = arith.constant 0 : index
      %c0_20 = arith.constant 0 : index
      %34 = vector.load %arg11[%c0_19, %c0_20] : memref<8x128xf32, #tpu.memory_space<vmem>>, vector<8x128xf32>
      tpu.vector_store %arg11[%c0_19, %c0_20], %33 {strides = array<i32>} : memref<8x128xf32, #tpu.memory_space<vmem>>, vector<8x128xf32>,
    } else {
    }
    return
  }
  func.func @transform_0(%arg0: i32, %arg1: i32, %arg2: memref<2xi32, #tpu.memory_space<smem>>, %arg3: memref<2xi32, #tpu.memory_space<smem>>) -> (i32, i32) {
    %c1_i32 = arith.constant 1 : i32
    %0 = arith.muli %arg0, %c1_i32 : i32
    %1 = arith.addi %0, %arg1 : i32
    %2 = arith.index_cast %1 : i32 to index
    %3 = memref.load %arg2[%2] : memref<2xi32, #tpu.memory_space<smem>>
    %c0_i32 = arith.constant 0 : i32
    %c0_i32_0 = arith.constant 0 : i32
    return %c0_i32, %3 : i32, i32
  }
  func.func @transform_1(%arg0: i32, %arg1: i32, %arg2: memref<2xi32, #tpu.memory_space<smem>>, %arg3: memref<2xi32, #tpu.memory_space<smem>>) -> (i32, i32) {
    %c1_i32 = arith.constant 1 : i32
    %0 = arith.muli %arg0, %c1_i32 : i32
    %1 = arith.addi %0, %arg1 : i32
    %2 = arith.index_cast %1 : i32 to index
    %3 = memref.load %arg2[%2] : memref<2xi32, #tpu.memory_space<smem>>
    %c0_i32 = arith.constant 0 : i32
    %c0_i32_0 = arith.constant 0 : i32
    return %3, %c0_i32 : i32, i32
  }
  func.func @transform_2(%arg0: i32, %arg1: i32, %arg2: memref<2xi32, #tpu.memory_space<smem>>, %arg3: memref<2xi32, #tpu.memory_space<smem>>) -> (i32, i32) {
    %c0_i32 = arith.constant 0 : i32
    %c0_i32_0 = arith.constant 0 : i32
    return %arg0, %c0_i32 : i32, i32
  }
  func.func @transform_3(%arg0: i32, %arg1: i32, %arg2: memref<2xi32, #tpu.memory_space<smem>>, %arg3: memref<2xi32, #tpu.memory_space<smem>>) -> (i32, i32) {
    %c0_i32 = arith.constant 0 : i32
    %c0_i32_0 = arith.constant 0 : i32
    %c0_i32_1 = arith.constant 0 : i32
    return %c0_i32, %c0_i32_0 : i32, i32
  }
  func.func @transform_4(%arg0: i32, %arg1: i32, %arg2: memref<2xi32, #tpu.memory_space<smem>>, %arg3: memref<2xi32, #tpu.memory_space<smem>>) -> (i32, i32) {
    %c0_i32 = arith.constant 0 : i32
    %c0_i32_0 = arith.constant 0 : i32
    %c0_i32_1 = arith.constant 0 : i32
    return %c0_i32, %c0_i32_0 : i32, i32
  }
  func.func @transform_5(%arg0: i32, %arg1: i32, %arg2: memref<2xi32, #tpu.memory_space<smem>>, %arg3: memref<2xi32, #tpu.memory_space<smem>>) -> (i32, i32) {
    %c0_i32 = arith.constant 0 : i32
    %c0_i32_0 = arith.constant 0 : i32
    %c0_i32_1 = arith.constant 0 : i32
    return %c0_i32, %c0_i32_0 : i32, i32
  }
  func.func @transform_6(%arg0: i32, %arg1: i32, %arg2: memref<2xi32, #tpu.memory_space<smem>>, %arg3: memref<2xi32, #tpu.memory_space<smem>>) -> (i32, i32) {
    %c0_i32 = arith.constant 0 : i32
    %c0_i32_0 = arith.constant 0 : i32
    %c0_i32_1 = arith.constant 0 : i32
    return %c0_i32, %c0_i32_0 : i32, i32
  }
  func.func @transform_7(%arg0: i32, %arg1: i32, %arg2: memref<2xi32, #tpu.memory_space<smem>>, %arg3: memref<2xi32, #tpu.memory_space<smem>>) -> (i32, i32) {
    %c0_i32 = arith.constant 0 : i32
    %c0_i32_0 = arith.constant 0 : i32
    return %arg0, %c0_i32 : i32, i32
  }
}

</mosaic_0001>

<llo_original>
// kernel: tpu_custom_call.1
$region0: #{tpu_custom_call.1}
  #allocation0 [shape = 'u32[]', space=smem, size = 0x4, offset = 0x4, fixed_abs, tag = 'smem constant byte address 0x4 - core index']
  #allocation1 [shape = 'u32[144,128]{1,0:T(1,128)}', space=vmem, size = 0x12000, scoped, tag = 'internal scratch']
  #allocation2 [shape = 'f32[8,128]{1,0:T(8,128)}', space=vmem, size = 0x1000, scoped, tag = 'scratch operand']
  #allocation3 [shape = 's32[1]{0}', space=sflag, size = 0x4, scoped, tag = 'scoped memory for tpu_custom_call.1']
  #allocation4 [shape = 'u8[512]{0}', space=smem, size = 0x200, scoped, tag = 'prefetched SMEM operand 0']
  #allocation5 [shape = 'u8[512]{0}', space=smem, size = 0x200, scoped, tag = 'prefetched SMEM operand 1']
  %s0 = inlined_call_operand.hbm [shape: s32[2], index: 0, kind: input, shape index: {}]
  %s1 = inlined_call_operand.vmem [shape: s32[2], index: 1, kind: input, shape index: {}]
  %s2 = inlined_call_operand.vmem [shape: s32[1,128], index: 2, kind: input, shape index: {}]
  %s3 = inlined_call_operand.hbm [shape: bf16[128,128], index: 3, kind: input, shape index: {}]
  %s4 = inlined_call_operand.hbm [shape: f32[16,128], index: 4, kind: input, shape index: {}]
  %s5 = inlined_call_operand.hbm [shape: f32[128,128], index: 5, kind: input, shape index: {}]
  %s6 = inlined_call_operand.vmem [shape: f32[1,128], index: 6, kind: input, shape index: {}]
  %s7 = inlined_call_operand.hbm [shape: f32[128,128], index: 7, kind: input, shape index: {}]
  %s8 = inlined_call_operand.vmem [shape: f32[1,128], index: 8, kind: input, shape index: {}]
  %s9 = inlined_call_operand.hbm [shape: f32[16,128], index: 9, kind: output, shape index: {}]
  %s10 = sld [smem:[#allocation0]]
  $region89: #{tpu_custom_call.1} parent=0
    _
  %s12 = ssub.s32 1, %s10
  %s13 = scalar_select 0, %s12, %s10
  %15 = dma.hbm_to_smem %s0, 16, [#allocation4], [#allocation3]
  %s16 = sshll.u32 %s1, 4
  %s17 = int_to_ptr.vmem [resolvable:$true] %s16
  %19 = dma.vmem_to_smem %s17, 16, [#allocation5], [#allocation3]
  %20 = dma.done [#allocation3], 32
  %21 = sfence
  $region1: #{tpu_custom_call.1} parent=0
    #allocation6 [shape = 'u8[65536]{0}', space=vmem, size = 0x10000, scoped, tag = 'input window, operand 3']
    #allocation7 [shape = 's32[2]{0}', space=sflag, size = 0x8, scoped, tag = 'scoped memory for tpu_custom_call.1']
    #allocation8 [shape = 's32[2]{0}', space=sflag, size = 0x8, scoped, tag = 'scoped memory for tpu_custom_call.1']
    #allocation9 [shape = 'u8[8192]{0}', space=vmem, size = 0x2000, scoped, tag = 'input window, operand 4']
    #allocation10 [shape = 's32[2]{0}', space=sflag, size = 0x8, scoped, tag = 'scoped memory for tpu_custom_call.1']
    #allocation11 [shape = 'u8[65536]{0}', space=vmem, size = 0x10000, scoped, tag = 'input window, operand 5, single buffered']
    #allocation12 [shape = 'u8[65536]{0}', space=vmem, size = 0x10000, scoped, tag = 'input window, operand 7, single buffered']
    #allocation13 [shape = 's32[1]{0}', space=sflag, size = 0x4, scoped, tag = 'scoped memory for tpu_custom_call.1']
    #allocation14 [shape = 'u8[8192]{0}', space=vmem, size = 0x2000, scoped, tag = 'output window, operand 0']
    %22 = vsyncpa [#allocation7], 0
    %s23 = scalar_lea.sflag [#allocation7], 1
    %24 = vsyncpa %s23, 0
    %25 = vsyncpa [#allocation10], 0
    %s26 = scalar_lea.sflag [#allocation10], 1
    %27 = vsyncpa %s26, 0
    %28 = vsyncpa [#allocation13], 0
    %29 = vsyncpa [#allocation8], 0
    %s30 = scalar_lea.sflag [#allocation8], 1
    %31 = vsyncpa %s30, 0
    loop: start=0, step=1, limit=4
    $region2: #{tpu_custom_call.1} parent=1 // loop_pre_header
      _
    $region3: #{tpu_custom_call.1} parent=1 // loop_header
      %s33 = sphi 0, %s37
      %p34 = scmp.ge.s32.totalorder %s33, 4
      %s40 = sphi 0, %s52
      %s41 = sphi 0, %s48
      %s42 = sphi 0, %s40
      %s43 = sphi 0, %s41
      %s44 = sphi 0, %s42
      %s45 = sphi 0, %s43
      %s59 = sphi 0, %s61
      %s62 = sphi 0, %s59
      %s63 = sphi 0, %s62
      %s79 = sphi 0, %s63
      %s89 = sphi 0, %s91
      %s92 = sphi 0, %s89
      %s93 = sphi 0, %s92
      %s109 = sphi 0, %s93
      %s115 = sphi 0, %s117
      %s118 = sphi 0, %s115
      %s119 = sphi 0, %s118
      %s135 = sphi 0, %s119
      %s139 = sphi 0, %s139
      %s141 = sphi 0, %s139
      %s142 = sphi 0, %s141
      %s156 = sphi 0, %s142
      %s160 = sphi 0, %s160
      %s162 = sphi 0, %s160
      %s163 = sphi 0, %s162
      %s177 = sphi 0, %s163
      %s181 = sphi 0, %s181
      %s183 = sphi 0, %s181
      %s184 = sphi 0, %s183
      %s198 = sphi 0, %s184
      %s202 = sphi 0, %s202
      %s204 = sphi 0, %s202
      %s205 = sphi 0, %s204
      %s219 = sphi 0, %s205
      %s225 = sphi 0, %s227
      %s228 = sphi 0, %s225
      %s229 = sphi 0, %s228
      %s245 = sphi 0, %s229
    $region4: #{tpu_custom_call.1} parent=1 // loop_header_branch
      %36 = sbr.rel (%p34) target = $region8
    $region5: #{tpu_custom_call.1} parent=1 // loop_body
      %s38 = ssub.s32 %s33, 1
      %s39 = ssub.s32 %s33, 2
      %s46 = sadd.s32 1, %s41
      %p47 = scmp.ge.s32.totalorder %s46, 1
      %s48 = scalar_select %p47, 0, %s46
      %s49 = sadd.s32 1, %s40
      %s50 = scalar_select %p47, %s49, %s40
      %p51 = scmp.ge.s32.totalorder %s50, 2
      %s52 = scalar_select %p51, 0, %s50
      %s53 = sadd.s32 %s40, %s41
      %s54 = sld [smem:[#allocation4 + %s53]]
      %s55 = sadd.s32 %s52, %s48
      %s56 = sld [smem:[#allocation4 + %s55]]
      %s57 = ssub.s32 %s54, %s56
      %p58 = scmp.eq.s32.totalorder %s57, 0
      %s60 = sadd.s32 %s59, 1
      %s61 = scalar_select %p58, %s59, %s60
      %p64 = pneg %p58
      %p65 = scmp.eq.s32.totalorder %s33, 1
      %p66 = por %p64, %p65
      %p67 = scmp.ne.s32.totalorder %s59, %s62
      %p68 = scmp.eq.s32.totalorder %s33, 0
      %p69 = por %p67, %p68
      %p70 = scmp.ne.s32.totalorder %s59, %s62
      %p71 = scmp.eq.s32.totalorder %s38, 1
      %p72 = por %p70, %p71
      %p73 = scmp.ne.s32.totalorder %s62, %s63
      %p74 = scmp.eq.s32.totalorder %s38, 0
      %p75 = por %p73, %p74
      %p76 = scmp.ne.s32.totalorder %s62, %s63
      %p77 = scmp.eq.s32.totalorder %s39, 1
      %p78 = por %p76, %p77
      %p80 = scmp.ne.s32.totalorder %s63, %s79
      %p81 = scmp.eq.s32.totalorder %s39, 0
      %p82 = por %p80, %p81
      %s83 = sadd.s32 %s40, %s41
      %s84 = sld [smem:[#allocation4 + %s83]]
      %s85 = sadd.s32 %s52, %s48
      %s86 = sld [smem:[#allocation4 + %s85]]
      %s87 = ssub.s32 %s84, %s86
      %p88 = scmp.eq.s32.totalorder %s87, 0
      %s90 = sadd.s32 %s89, 1
      %s91 = scalar_select %p88, %s89, %s90
      %p94 = pneg %p88
      %p95 = scmp.eq.s32.totalorder %s33, 1
      %p96 = por %p94, %p95
      %p97 = scmp.ne.s32.totalorder %s89, %s92
      %p98 = scmp.eq.s32.totalorder %s33, 0
      %p99 = por %p97, %p98
      %p100 = scmp.ne.s32.totalorder %s89, %s92
      %p101 = scmp.eq.s32.totalorder %s38, 1
      %p102 = por %p100, %p101
      %p103 = scmp.ne.s32.totalorder %s92, %s93
      %p104 = scmp.eq.s32.totalorder %s38, 0
      %p105 = por %p103, %p104
      %p106 = scmp.ne.s32.totalorder %s92, %s93
      %p107 = scmp.eq.s32.totalorder %s39, 1
      %p108 = por %p106, %p107
      %p110 = scmp.ne.s32.totalorder %s93, %s109
      %p111 = scmp.eq.s32.totalorder %s39, 0
      %p112 = por %p110, %p111
      %s113 = ssub.s32 %s40, %s52
      %p114 = scmp.eq.s32.totalorder %s113, 0
      %s116 = sadd.s32 %s115, 1
      %s117 = scalar_select %p114, %s115, %s116
      %p120 = pneg %p114
      %p121 = scmp.eq.s32.totalorder %s33, 1
      %p122 = por %p120, %p121
      %p123 = scmp.ne.s32.totalorder %s115, %s118
      %p124 = scmp.eq.s32.totalorder %s33, 0
      %p125 = por %p123, %p124
      %p126 = scmp.ne.s32.totalorder %s115, %s118
      %p127 = scmp.eq.s32.totalorder %s38, 1
      %p128 = por %p126, %p127
      %p129 = scmp.ne.s32.totalorder %s118, %s119
      %p130 = scmp.eq.s32.totalorder %s38, 0
      %p131 = por %p129, %p130
      %p132 = scmp.ne.s32.totalorder %s118, %s119
      %p133 = scmp.eq.s32.totalorder %s39, 1
      %p134 = por %p132, %p133
      %p136 = scmp.ne.s32.totalorder %s119, %s135
      %p137 = scmp.eq.s32.totalorder %s39, 0
      %p138 = por %p136, %p137
      %s140 = sadd.s32 %s139, 1
      %p143 = scmp.eq.s32.totalorder %s33, 1
      %p144 = scmp.ne.s32.totalorder %s139, %s141
      %p145 = scmp.eq.s32.totalorder %s33, 0
      %p146 = por %p144, %p145
      %p147 = scmp.ne.s32.totalorder %s139, %s141
      %p148 = scmp.eq.s32.totalorder %s38, 1
      %p149 = por %p147, %p148
      %p150 = scmp.ne.s32.totalorder %s141, %s142
      %p151 = scmp.eq.s32.totalorder %s38, 0
      %p152 = por %p150, %p151
      %p153 = scmp.ne.s32.totalorder %s141, %s142
      %p154 = scmp.eq.s32.totalorder %s39, 1
      %p155 = por %p153, %p154
      %p157 = scmp.ne.s32.totalorder %s142, %s156
      %p158 = scmp.eq.s32.totalorder %s39, 0
      %p159 = por %p157, %p158
      %s161 = sadd.s32 %s160, 1
      %p164 = scmp.eq.s32.totalorder %s33, 1
      %p165 = scmp.ne.s32.totalorder %s160, %s162
      %p166 = scmp.eq.s32.totalorder %s33, 0
      %p167 = por %p165, %p166
      %p168 = scmp.ne.s32.totalorder %s160, %s162
      %p169 = scmp.eq.s32.totalorder %s38, 1
      %p170 = por %p168, %p169
      %p171 = scmp.ne.s32.totalorder %s162, %s163
      %p172 = scmp.eq.s32.totalorder %s38, 0
      %p173 = por %p171, %p172
      %p174 = scmp.ne.s32.totalorder %s162, %s163
      %p175 = scmp.eq.s32.totalorder %s39, 1
      %p176 = por %p174, %p175
      %p178 = scmp.ne.s32.totalorder %s163, %s177
      %p179 = scmp.eq.s32.totalorder %s39, 0
      %p180 = por %p178, %p179
      %s182 = sadd.s32 %s181, 1
      %p185 = scmp.eq.s32.totalorder %s33, 1
      %p186 = scmp.ne.s32.totalorder %s181, %s183
      %p187 = scmp.eq.s32.totalorder %s33, 0
      %p188 = por %p186, %p187
      %p189 = scmp.ne.s32.totalorder %s181, %s183
      %p190 = scmp.eq.s32.totalorder %s38, 1
      %p191 = por %p189, %p190
      %p192 = scmp.ne.s32.totalorder %s183, %s184
      %p193 = scmp.eq.s32.totalorder %s38, 0
      %p194 = por %p192, %p193
      %p195 = scmp.ne.s32.totalorder %s183, %s184
      %p196 = scmp.eq.s32.totalorder %s39, 1
      %p197 = por %p195, %p196
      %p199 = scmp.ne.s32.totalorder %s184, %s198
      %p200 = scmp.eq.s32.totalorder %s39, 0
      %p201 = por %p199, %p200
      %s203 = sadd.s32 %s202, 1
      %p206 = scmp.eq.s32.totalorder %s33, 1
      %p207 = scmp.ne.s32.totalorder %s202, %s204
      %p208 = scmp.eq.s32.totalorder %s33, 0
      %p209 = por %p207, %p208
      %p210 = scmp.ne.s32.totalorder %s202, %s204
      %p211 = scmp.eq.s32.totalorder %s38, 1
      %p212 = por %p210, %p211
      %p213 = scmp.ne.s32.totalorder %s204, %s205
      %p214 = scmp.eq.s32.totalorder %s38, 0
      %p215 = por %p213, %p214
      %p216 = scmp.ne.s32.totalorder %s204, %s205
      %p217 = scmp.eq.s32.totalorder %s39, 1
      %p218 = por %p216, %p217
      %p220 = scmp.ne.s32.totalorder %s205, %s219
      %p221 = scmp.eq.s32.totalorder %s39, 0
      %p222 = por %p220, %p221
      %s223 = ssub.s32 %s40, %s52
      %p224 = scmp.eq.s32.totalorder %s223, 0
      %s226 = sadd.s32 %s225, 1
      %s227 = scalar_select %p224, %s225, %s226
      %p230 = pneg %p224
      %p231 = scmp.eq.s32.totalorder %s33, 1
      %p232 = por %p230, %p231
      %p233 = scmp.ne.s32.totalorder %s225, %s228
      %p234 = scmp.eq.s32.totalorder %s33, 0
      %p235 = por %p233, %p234
      %p236 = scmp.ne.s32.totalorder %s225, %s228
      %p237 = scmp.eq.s32.totalorder %s38, 1
      %p238 = por %p236, %p237
      %p239 = scmp.ne.s32.totalorder %s228, %s229
      %p240 = scmp.eq.s32.totalorder %s38, 0
      %p241 = por %p239, %p240
      %p242 = scmp.ne.s32.totalorder %s228, %s229
      %p243 = scmp.eq.s32.totalorder %s39, 1
      %p244 = por %p242, %p243
      %p246 = scmp.ne.s32.totalorder %s229, %s245
      %p247 = scmp.eq.s32.totalorder %s39, 0
      %p248 = por %p246, %p247
      %p249 = scmp.le.s32.totalorder 1, %s33
      %p250 = scmp.lt.s32.totalorder %s33, 3
      %p251 = pnand %p249, %p250
      %p252 = pneg %p251
      // Predicated region
      $region9: #{tpu_custom_call.1} parent=5 // pred_check
        _
      $region10: #{tpu_custom_call.1} parent=5 // pred_check_branch
        %254 = sbr.rel (%p251) target = $region12
      $region11: #{tpu_custom_call.1} parent=5 // pred_region
        %s255 = ssub.s32 %s33, 1
        // Predicated region
        $region13: #{tpu_custom_call.1} parent=11 // pred_check
          %p256 = pneg %p152
        $region14: #{tpu_custom_call.1} parent=11 // pred_check_branch
          %258 = sbr.rel (%p256) target = $region16
        $region15: #{tpu_custom_call.1} parent=11 // pred_region
          %s260 = ssub.s32 2048, 2048
          %261 = vsyncadd [#allocation10], %s260
          %s262 = sshll.u32 [#allocation11], 4
          %s263 = int_to_ptr.vmem [resolvable:$true] %s262
          %268 = dma.hbm_to_vmem [thread:$0]  %s5, 2048, %s263, [#allocation10], 128, 128, 8
        $region16: #{tpu_custom_call.1} parent=11 // pred_fallthru
          _
        // Predicated region
        $region17: #{tpu_custom_call.1} parent=11 // pred_check
          %p269 = pneg %p173
        $region18: #{tpu_custom_call.1} parent=11 // pred_check_branch
          %271 = sbr.rel (%p269) target = $region20
        $region19: #{tpu_custom_call.1} parent=11 // pred_region
          _
        $region20: #{tpu_custom_call.1} parent=11 // pred_fallthru
          _
        // Predicated region
        $region21: #{tpu_custom_call.1} parent=11 // pred_check
          %p272 = pneg %p194
        $region22: #{tpu_custom_call.1} parent=11 // pred_check_branch
          %274 = sbr.rel (%p272) target = $region24
        $region23: #{tpu_custom_call.1} parent=11 // pred_region
          %s276 = ssub.s32 2048, 2048
          %277 = vsyncadd [#allocation13], %s276
          %s278 = sshll.u32 [#allocation12], 4
          %s279 = int_to_ptr.vmem [resolvable:$true] %s278
          %284 = dma.hbm_to_vmem [thread:$0]  %s7, 2048, %s279, [#allocation13], 128, 128, 8
        $region24: #{tpu_custom_call.1} parent=11 // pred_fallthru
          _
        // Predicated region
        $region25: #{tpu_custom_call.1} parent=11 // pred_check
          %p285 = pneg %p215
        $region26: #{tpu_custom_call.1} parent=11 // pred_check_branch
          %287 = sbr.rel (%p285) target = $region28
        $region27: #{tpu_custom_call.1} parent=11 // pred_region
          _
        $region28: #{tpu_custom_call.1} parent=11 // pred_fallthru
          _
      $region12: #{tpu_custom_call.1} parent=5 // pred_fallthru
        _
      %p288 = scmp.lt.s32.totalorder %s33, 2
      // Predicated region
      $region29: #{tpu_custom_call.1} parent=5 // pred_check
        %p289 = pneg %p288
      $region30: #{tpu_custom_call.1} parent=5 // pred_check_branch
        %291 = sbr.rel (%p289) target = $region32
      $region31: #{tpu_custom_call.1} parent=5 // pred_region
        // Predicated region
        $region33: #{tpu_custom_call.1} parent=31 // pred_check
          %p292 = pneg %p69
        $region34: #{tpu_custom_call.1} parent=31 // pred_check_branch
          %294 = sbr.rel (%p292) target = $region36
        $region35: #{tpu_custom_call.1} parent=31 // pred_region
          %s295 = sadd.s32 %s40, %s41
          %s296 = sld [smem:[#allocation4 + %s295]]
          %p297 = scmp.lt.s32.totalorder %s296, 0
          %s298 = scalar_select %p297, %s296, 0
          %s299 = scalar_lea.vmem %s2, %s298
          %s300 = sadd.s32 %s40, %s41
          %s301 = sld [smem:[#allocation4 + %s300]]
        $region36: #{tpu_custom_call.1} parent=31 // pred_fallthru
          _
        // Predicated region
        $region37: #{tpu_custom_call.1} parent=31 // pred_check
          %p302 = pneg %p99
        $region38: #{tpu_custom_call.1} parent=31 // pred_check_branch
          %304 = sbr.rel (%p302) target = $region40
        $region39: #{tpu_custom_call.1} parent=31 // pred_region
          %s305 = sand.u32 %s89, 1
          %s306 = scalar_lea.sflag [#allocation7], %s305
          %s307 = sand.u32 %s89, 1
          %s308 = smul.addr %s307, 64
          %s309 = scalar_lea.vmem [#allocation6], %s308
          %s310 = sadd.s32 %s40, %s41
          %s311 = sld [smem:[#allocation4 + %s310]]
          %s312 = smul.u32 16, %s311
          %s314 = ssub.s32 1024, 1024
          %315 = vsyncadd %s306, %s314
          %s316 = smul.addr %s312, 64
          %s317 = scalar_lea.hbm %s3, %s316
          %s318 = sshll.u32 %s309, 4
          %s319 = int_to_ptr.vmem [resolvable:$true] %s318
          %324 = dma.hbm_to_vmem [thread:$0]  %s317, 1024, %s319, %s306, 64, 64, 4
        $region40: #{tpu_custom_call.1} parent=31 // pred_fallthru
          _
        // Predicated region
        $region41: #{tpu_custom_call.1} parent=31 // pred_check
          %p325 = pneg %p125
        $region42: #{tpu_custom_call.1} parent=31 // pred_check_branch
          %327 = sbr.rel (%p325) target = $region44
        $region43: #{tpu_custom_call.1} parent=31 // pred_region
          %s328 = sand.u32 %s33, 1
          %s329 = scalar_lea.sflag [#allocation10], %s328
          %s330 = sand.u32 %s115, 1
          %s331 = smul.addr %s330, 8
          %s332 = scalar_lea.vmem [#allocation9], %s331
          %s334 = ssub.s32 128, 128
          %335 = vsyncadd %s329, %s334
          %s336 = smul.addr %s40, 128
          %s337 = scalar_lea.hbm %s4, %s336
          %s339 = sshll.u32 %s332, 4
          %s340 = int_to_ptr.vmem [resolvable:$true] %s339
          %342 = dma.hbm_to_vmem [thread:$0]  %s337, 128, %s340, %s329
        $region44: #{tpu_custom_call.1} parent=31 // pred_fallthru
          _
      $region32: #{tpu_custom_call.1} parent=5 // pred_fallthru
        _
      %p343 = scmp.le.s32.totalorder 1, %s33
      %p344 = scmp.lt.s32.totalorder %s33, 3
      %p345 = pnand %p343, %p344
      %p346 = pneg %p345
      // Predicated region
      $region45: #{tpu_custom_call.1} parent=5 // pred_check
        _
      $region46: #{tpu_custom_call.1} parent=5 // pred_check_branch
        %348 = sbr.rel (%p345) target = $region48
      $region47: #{tpu_custom_call.1} parent=5 // pred_region
        %s349 = ssub.s32 %s33, 1
        %s350 = sand.u32 %s92, 1
        %s351 = scalar_lea.sflag [#allocation7], %s350
        %s352 = sand.u32 %s92, 1
        %s353 = smul.addr %s352, 64
        %s354 = scalar_lea.vmem [#allocation6], %s353
        // Predicated region
        $region49: #{tpu_custom_call.1} parent=47 // pred_check
          %p355 = pneg %p105
        $region50: #{tpu_custom_call.1} parent=47 // pred_check_branch
          %357 = sbr.rel (%p355) target = $region52
        $region51: #{tpu_custom_call.1} parent=47 // pred_region
          %358 = dma.done %s351, 1024
        $region52: #{tpu_custom_call.1} parent=47 // pred_fallthru
          _
        %s359 = sand.u32 %s38, 1
        %s360 = scalar_lea.sflag [#allocation10], %s359
        %s361 = sand.u32 %s118, 1
        %s362 = smul.addr %s361, 8
        %s363 = scalar_lea.vmem [#allocation9], %s362
        // Predicated region
        $region53: #{tpu_custom_call.1} parent=47 // pred_check
          %p364 = pneg %p131
        $region54: #{tpu_custom_call.1} parent=47 // pred_check_branch
          %366 = sbr.rel (%p364) target = $region56
        $region55: #{tpu_custom_call.1} parent=47 // pred_region
          %367 = dma.done %s360, 128
        $region56: #{tpu_custom_call.1} parent=47 // pred_fallthru
          _
        // Predicated region
        $region57: #{tpu_custom_call.1} parent=47 // pred_check
          %p368 = pneg %p152
        $region58: #{tpu_custom_call.1} parent=47 // pred_check_branch
          %370 = sbr.rel (%p368) target = $region60
        $region59: #{tpu_custom_call.1} parent=47 // pred_region
          %371 = dma.done [#allocation10], 2048
        $region60: #{tpu_custom_call.1} parent=47 // pred_fallthru
          _
        // Predicated region
        $region61: #{tpu_custom_call.1} parent=47 // pred_check
          %p372 = pneg %p194
        $region62: #{tpu_custom_call.1} parent=47 // pred_check_branch
          %374 = sbr.rel (%p372) target = $region64
        $region63: #{tpu_custom_call.1} parent=47 // pred_region
          %375 = dma.done [#allocation13], 2048
        $region64: #{tpu_custom_call.1} parent=47 // pred_fallthru
          _
        %s376 = sadd.s32 %s42, %s43
        %s377 = sld [smem:[#allocation4 + %s376]]
        %p378 = scmp.lt.s32.totalorder %s377, 0
        %s379 = scalar_select %p378, %s377, 0
        %s380 = scalar_lea.vmem %s2, %s379
        %p381 = pneg %p75
        %p382 = pneg %p72
        %s383 = sand.u32 %s92, 1
        %s384 = scalar_lea.sflag [#allocation7], %s383
        %s385 = sand.u32 %s92, 1
        %s386 = smul.addr %s385, 64
        %s387 = scalar_lea.vmem [#allocation6], %s386
        %p388 = pneg %p105
        %p389 = pneg %p102
        %s390 = sand.u32 %s38, 1
        %s391 = scalar_lea.sflag [#allocation10], %s390
        %s392 = sand.u32 %s118, 1
        %s393 = smul.addr %s392, 8
        %s394 = scalar_lea.vmem [#allocation9], %s393
        %p395 = pneg %p131
        %p396 = pneg %p128
        %p397 = pneg %p152
        %p398 = pneg %p149
        %p399 = pneg %p173
        %p400 = pneg %p170
        %p401 = pneg %p194
        %p402 = pneg %p191
        %p403 = pneg %p215
        %p404 = pneg %p212
        %p405 = pneg %p241
        %p406 = pneg %p238
        %s407 = sand.u32 %s228, 1
        %s408 = scalar_lea.sflag [#allocation8], %s407
        %s409 = sand.u32 %s228, 1
        %s410 = smul.addr %s409, 8
        %s411 = scalar_lea.vmem [#allocation14], %s410
        %s412 = sadd.s32 %s42, %s43
        %s413 = sld [smem:[#allocation4 + %s412]]
        %p414 = scmp.lt.s32.totalorder %s413, 0
        %s415 = scalar_select %p414, %s413, 0
        %s416 = scalar_lea.vmem %s2, %s415
        %s417 = sadd.s32 %s42, %s43
        %s418 = sld [smem:[#allocation4 + %s417]]
        %s419 = sadd.s32 %s42, %s43
        %s420 = sld [smem:[#allocation4 + %s419]]
        %s421 = smul.u32 16, %s420
        %p423 = scmp.eq.s32.totalorder %s43, 0
        // Predicated region
        $region65: #{tpu_custom_call.1} parent=47 // pred_check
          %p424 = pneg %p423
        $region66: #{tpu_custom_call.1} parent=47 // pred_check_branch
          %426 = sbr.rel (%p424) target = $region68
        $region67: #{tpu_custom_call.1} parent=47 // pred_region
          %427 = vst [vmem:[#allocation2] sm:$0xff] 0.0
        $region68: #{tpu_custom_call.1} parent=47 // pred_fallthru
          _
        %s428 = sld [smem:[#allocation5 + %s42]]
        %p429 = scmp.lt.s32.totalorder %s43, %s428
        // Predicated region
        $region69: #{tpu_custom_call.1} parent=47 // pred_check
          %p430 = pneg %p429
        $region70: #{tpu_custom_call.1} parent=47 // pred_check_branch
          %432 = sbr.rel (%p430) target = $region72
        $region71: #{tpu_custom_call.1} parent=47 // pred_region
          %v433 = vld [vmem:[%s416] sm:$0x1]
          %s434 = smul.u32 %s42, 8
          %v435 = vstv %s434
          %v436 = vsub.s32 %v433, %v435
          %v437 = vlaneseq
          %v438 = vshrl.u32 %v437, 7
          %v439 = vlaneseq
          %v440 = vshrl.u32 %v439, 7
          %v441 = vsub.s32 0, %v440
          %v442 = vrot.slane %v436, %v441
          %vm443 = vcmp.eq.s32.totalorder %v438, %v442
          %v444 = vsel %vm443, 1, 0
          %v445 = vcvt.s32.f32 %v444
          %v446 = vpack.c.bf16 %v445, %v445
          %v447 = vld [vmem:[#allocation2] sm:$0xff]
          %v448 = vld [vmem:[%s354] sm:$0xf]
          %v449 = vld [vmem:[%s354 + $0x4] sm:$0xf]
          %v450 = vld [vmem:[%s354 + $0x8] sm:$0xf]
          %v451 = vld [vmem:[%s354 + $0xc] sm:$0xf]
          %v452 = vld [vmem:[%s354 + $0x10] sm:$0xf]
          %v453 = vld [vmem:[%s354 + $0x14] sm:$0xf]
          %v454 = vld [vmem:[%s354 + $0x18] sm:$0xf]
          %v455 = vld [vmem:[%s354 + $0x1c] sm:$0xf]
          %v456 = vld [vmem:[%s354 + $0x20] sm:$0xf]
          %v457 = vld [vmem:[%s354 + $0x24] sm:$0xf]
          %v458 = vld [vmem:[%s354 + $0x28] sm:$0xf]
          %v459 = vld [vmem:[%s354 + $0x2c] sm:$0xf]
          %v460 = vld [vmem:[%s354 + $0x30] sm:$0xf]
          %v461 = vld [vmem:[%s354 + $0x34] sm:$0xf]
          %v462 = vld [vmem:[%s354 + $0x38] sm:$0xf]
          %v463 = vld [vmem:[%s354 + $0x3c] sm:$0xf]
          %v480 = vunpack.c.l.b16 %v448
          %v481 = vunpack.c.l.b16 %v449
          %v482 = vunpack.c.l.b16 %v450
          %v483 = vunpack.c.l.b16 %v451
          %v484 = vunpack.c.l.b16 %v452
          %v485 = vunpack.c.l.b16 %v453
          %v486 = vunpack.c.l.b16 %v454
          %v487 = vunpack.c.l.b16 %v455
          %v488 = vunpack.c.l.b16 %v456
          %v489 = vunpack.c.l.b16 %v457
          %v490 = vunpack.c.l.b16 %v458
          %v491 = vunpack.c.l.b16 %v459
          %v492 = vunpack.c.l.b16 %v460
          %v493 = vunpack.c.l.b16 %v461
          %v494 = vunpack.c.l.b16 %v462
          %v495 = vunpack.c.l.b16 %v463
          %v496 = vpack.c.b16 %v481, %v480
          %v497 = vpack.c.b16 %v483, %v482
          %v498 = vpack.c.b16 %v485, %v484
          %v499 = vpack.c.b16 %v487, %v486
          %v500 = vpack.c.b16 %v489, %v488
          %v501 = vpack.c.b16 %v491, %v490
          %v502 = vpack.c.b16 %v493, %v492
          %v503 = vpack.c.b16 %v495, %v494
          %512 = vmatprep.subr.bf16.mxu0 0
          %513 = vmatpush1.bf16.msra.mxu0 %v496
          %514 = vmatprep.subr.bf16.mxu0 0
          %515 = vmatpush1.bf16.msra.mxu0 %v497
          %516 = vmatprep.subr.bf16.mxu0 0
          %517 = vmatpush1.bf16.msra.mxu0 %v498
          %518 = vmatprep.subr.bf16.mxu0 0
          %519 = vmatpush1.bf16.msra.mxu0 %v499
          %520 = vmatprep.subr.bf16.mxu0 0
          %521 = vmatpush1.bf16.msra.mxu0 %v500
          %522 = vmatprep.subr.bf16.mxu0 0
          %523 = vmatpush1.bf16.msra.mxu0 %v501
          %524 = vmatprep.subr.bf16.mxu0 0
          %525 = vmatpush1.bf16.msra.mxu0 %v502
          %526 = vmatprep.subr.bf16.mxu0 0
          %527 = vmatpush1.bf16.msra.mxu0 %v503
          %528 = vmatprep.subr.bf16.mxu0 0
          %529 = vmatpush1.bf16.msra.mxu0 0
          %530 = vmatprep.subr.bf16.mxu0 0
          %531 = vmatpush1.bf16.msra.mxu0 0
          %532 = vmatprep.subr.bf16.mxu0 0
          %533 = vmatpush1.bf16.msra.mxu0 0
          %534 = vmatprep.subr.bf16.mxu0 0
          %535 = vmatpush1.bf16.msra.mxu0 0
          %536 = vmatprep.subr.bf16.mxu0 0
          %537 = vmatpush1.bf16.msra.mxu0 0
          %538 = vmatprep.subr.bf16.mxu0 0
          %539 = vmatpush1.bf16.msra.mxu0 0
          %540 = vmatprep.subr.bf16.mxu0 0
          %541 = vmatpush1.bf16.msra.mxu0 0
          %542 = vmatprep.subr.bf16.mxu0 0
          %543 = vmatpush1.bf16.msra.mxu0 0
          %544 = vmatprep.mubr.bf16.mxu0 0
          %545 = vmatmul.mubr.bf16.gmra.mrb[0].mxu0 %v446
          %v546 = vpop.f32.mrb[0].mxu0
          %v547 = vadd.f32 0.0, %v546
          %v548 = vpop.f32.mrb[0].mxu0
          %v549 = vpop.f32.mrb[0].mxu0
          %v550 = vpop.f32.mrb[0].mxu0
          %551 = vdwg.mxu0
          %v552 = vadd.f32 %v447, %v547
          %553 = vst [vmem:[#allocation2] sm:$0xff] %v552
        $region72: #{tpu_custom_call.1} parent=47 // pred_fallthru
          _
        // Predicated region
        $region73: #{tpu_custom_call.1} parent=47 // pred_check
          %p554 = pneg %p423
        $region74: #{tpu_custom_call.1} parent=47 // pred_check_branch
          %556 = sbr.rel (%p554) target = $region76
        $region75: #{tpu_custom_call.1} parent=47 // pred_region
          %v557 = vld [vmem:[#allocation2] sm:$0xff]
          %v558 = vld [vmem:[#allocation11] sm:$0xff]
          %v559 = vld [vmem:[#allocation11 + $0x8] sm:$0xff]
          %v560 = vld [vmem:[#allocation11 + $0x10] sm:$0xff]
          %v561 = vld [vmem:[#allocation11 + $0x18] sm:$0xff]
          %v562 = vld [vmem:[#allocation11 + $0x20] sm:$0xff]
          %v563 = vld [vmem:[#allocation11 + $0x28] sm:$0xff]
          %v564 = vld [vmem:[#allocation11 + $0x30] sm:$0xff]
          %v565 = vld [vmem:[#allocation11 + $0x38] sm:$0xff]
          %v566 = vld [vmem:[#allocation11 + $0x40] sm:$0xff]
          %v567 = vld [vmem:[#allocation11 + $0x48] sm:$0xff]
          %v568 = vld [vmem:[#allocation11 + $0x50] sm:$0xff]
          %v569 = vld [vmem:[#allocation11 + $0x58] sm:$0xff]
          %v570 = vld [vmem:[#allocation11 + $0x60] sm:$0xff]
          %v571 = vld [vmem:[#allocation11 + $0x68] sm:$0xff]
          %v572 = vld [vmem:[#allocation11 + $0x70] sm:$0xff]
          %v573 = vld [vmem:[#allocation11 + $0x78] sm:$0xff]
          %v574 = vld [vmem:[%s6] sm:$0x1]
          %v576 = vlaneseq
          %v577 = vshrl.u32 %v576, 7
          %v578 = vsub.s32 0, %v577
          %v579 = vrot.slane %v574, %v578
          %581 = vmatprep.subr.mxu0 0.0
          %582 = vmatpush1.msra.mxu0 %v558
          %583 = vmatprep.subr.mxu0 0.0
          %584 = vmatpush1.msra.mxu0 %v559
          %585 = vmatprep.subr.mxu0 0.0
          %586 = vmatpush1.msra.mxu0 %v560
          %587 = vmatprep.subr.mxu0 0.0
          %588 = vmatpush1.msra.mxu0 %v561
          %589 = vmatprep.subr.mxu0 0.0
          %590 = vmatpush1.msra.mxu0 %v562
          %591 = vmatprep.subr.mxu0 0.0
          %592 = vmatpush1.msra.mxu0 %v563
          %593 = vmatprep.subr.mxu0 0.0
          %594 = vmatpush1.msra.mxu0 %v564
          %595 = vmatprep.subr.mxu0 0.0
          %596 = vmatpush1.msra.mxu0 %v565
          %597 = vmatprep.subr.mxu0 0.0
          %598 = vmatpush1.msra.mxu0 %v566
          %599 = vmatprep.subr.mxu0 0.0
          %600 = vmatpush1.msra.mxu0 %v567
          %601 = vmatprep.subr.mxu0 0.0
          %602 = vmatpush1.msra.mxu0 %v568
          %603 = vmatprep.subr.mxu0 0.0
          %604 = vmatpush1.msra.mxu0 %v569
          %605 = vmatprep.subr.mxu0 0.0
          %606 = vmatpush1.msra.mxu0 %v570
          %607 = vmatprep.subr.mxu0 0.0
          %608 = vmatpush1.msra.mxu0 %v571
          %609 = vmatprep.subr.mxu0 0.0
          %610 = vmatpush1.msra.mxu0 %v572
          %611 = vmatprep.subr.mxu0 0.0
          %612 = vmatpush1.msra.mxu0 %v573
          %613 = vmatprep.subr.mxu0 0.0
          %614 = vmatpush1.msra.mxu0 0.0
          %615 = vmatprep.subr.mxu0 0.0
          %616 = vmatpush1.msra.mxu0 0.0
          %617 = vmatprep.subr.mxu0 0.0
          %618 = vmatpush1.msra.mxu0 0.0
          %619 = vmatprep.subr.mxu0 0.0
          %620 = vmatpush1.msra.mxu0 0.0
          %621 = vmatprep.subr.mxu0 0.0
          %622 = vmatpush1.msra.mxu0 0.0
          %623 = vmatprep.subr.mxu0 0.0
          %624 = vmatpush1.msra.mxu0 0.0
          %625 = vmatprep.subr.mxu0 0.0
          %626 = vmatpush1.msra.mxu0 0.0
          %627 = vmatprep.subr.mxu0 0.0
          %628 = vmatpush1.msra.mxu0 0.0
          %629 = vmatprep.subr.mxu0 0.0
          %630 = vmatpush1.msra.mxu0 0.0
          %631 = vmatprep.subr.mxu0 0.0
          %632 = vmatpush1.msra.mxu0 0.0
          %633 = vmatprep.subr.mxu0 0.0
          %634 = vmatpush1.msra.mxu0 0.0
          %635 = vmatprep.subr.mxu0 0.0
          %636 = vmatpush1.msra.mxu0 0.0
          %637 = vmatprep.subr.mxu0 0.0
          %638 = vmatpush1.msra.mxu0 0.0
          %639 = vmatprep.subr.mxu0 0.0
          %640 = vmatpush1.msra.mxu0 0.0
          %641 = vmatprep.subr.mxu0 0.0
          %642 = vmatpush1.msra.mxu0 0.0
          %643 = vmatprep.subr.mxu0 0.0
          %644 = vmatpush1.msra.mxu0 0.0
          %645 = vmatprep.mubr.f32.mxu0 0.0
          %646 = vmatmul.mubr.f32.gmra.mrb[0].mxu0 %v557
          %v647 = vpop.f32.mrb[0].mxu0
          %v648 = vadd.f32 %v579, %v647
          %v649 = vpop.f32.mrb[0].mxu0
          %650 = vdwg.mxu0
          %v651 = vmax.f32 %v648, 0.0
          %v652 = vand.u32 2147483647, %v648
          %v653 = vsub.f32 0.0, %v652
          %v654 = vmul.f32 %v653, 1.442695
          %v655 = vpow.pop %v654
          %v656 = vadd.f32 %v655, 1.0
          %v657 = vlog2.pop %v656
          %v658 = vmul.f32 %v657, 0.6931472
          %v659 = vmul.f32 -0.5, %v655
          %v660 = vadd.f32 %v659, 1.0
          %v661 = vmul.f32 %v660, %v655
          %v662 = vand.u32 2147483647, %v655
          %vm663 = vcmp.lt.f32.partialorder %v662, 0.0004427343
          %v664 = vsel %vm663, %v661, %v658
          %v665 = vadd.f32 %v651, %v664
          %v666 = vsub.f32 %v665, 0.6931472
          %v667 = vld [vmem:[#allocation12] sm:$0xff]
          %v668 = vld [vmem:[#allocation12 + $0x8] sm:$0xff]
          %v669 = vld [vmem:[#allocation12 + $0x10] sm:$0xff]
          %v670 = vld [vmem:[#allocation12 + $0x18] sm:$0xff]
          %v671 = vld [vmem:[#allocation12 + $0x20] sm:$0xff]
          %v672 = vld [vmem:[#allocation12 + $0x28] sm:$0xff]
          %v673 = vld [vmem:[#allocation12 + $0x30] sm:$0xff]
          %v674 = vld [vmem:[#allocation12 + $0x38] sm:$0xff]
          %v675 = vld [vmem:[#allocation12 + $0x40] sm:$0xff]
          %v676 = vld [vmem:[#allocation12 + $0x48] sm:$0xff]
          %v677 = vld [vmem:[#allocation12 + $0x50] sm:$0xff]
          %v678 = vld [vmem:[#allocation12 + $0x58] sm:$0xff]
          %v679 = vld [vmem:[#allocation12 + $0x60] sm:$0xff]
          %v680 = vld [vmem:[#allocation12 + $0x68] sm:$0xff]
          %v681 = vld [vmem:[#allocation12 + $0x70] sm:$0xff]
          %v682 = vld [vmem:[#allocation12 + $0x78] sm:$0xff]
          %v683 = vld [vmem:[%s8] sm:$0x1]
          %v685 = vlaneseq
          %v686 = vshrl.u32 %v685, 7
          %v687 = vsub.s32 0, %v686
          %v688 = vrot.slane %v683, %v687
          %690 = vmatprep.subr.mxu0 0.0
          %691 = vmatpush1.msra.mxu0 %v667
          %692 = vmatprep.subr.mxu0 0.0
          %693 = vmatpush1.msra.mxu0 %v668
          %694 = vmatprep.subr.mxu0 0.0
          %695 = vmatpush1.msra.mxu0 %v669
          %696 = vmatprep.subr.mxu0 0.0
          %697 = vmatpush1.msra.mxu0 %v670
          %698 = vmatprep.subr.mxu0 0.0
          %699 = vmatpush1.msra.mxu0 %v671
          %700 = vmatprep.subr.mxu0 0.0
          %701 = vmatpush1.msra.mxu0 %v672
          %702 = vmatprep.subr.mxu0 0.0
          %703 = vmatpush1.msra.mxu0 %v673
          %704 = vmatprep.subr.mxu0 0.0
          %705 = vmatpush1.msra.mxu0 %v674
          %706 = vmatprep.subr.mxu0 0.0
          %707 = vmatpush1.msra.mxu0 %v675
          %708 = vmatprep.subr.mxu0 0.0
          %709 = vmatpush1.msra.mxu0 %v676
          %710 = vmatprep.subr.mxu0 0.0
          %711 = vmatpush1.msra.mxu0 %v677
          %712 = vmatprep.subr.mxu0 0.0
          %713 = vmatpush1.msra.mxu0 %v678
          %714 = vmatprep.subr.mxu0 0.0
          %715 = vmatpush1.msra.mxu0 %v679
          %716 = vmatprep.subr.mxu0 0.0
          %717 = vmatpush1.msra.mxu0 %v680
          %718 = vmatprep.subr.mxu0 0.0
          %719 = vmatpush1.msra.mxu0 %v681
          %720 = vmatprep.subr.mxu0 0.0
          %721 = vmatpush1.msra.mxu0 %v682
          %722 = vmatprep.subr.mxu0 0.0
          %723 = vmatpush1.msra.mxu0 0.0
          %724 = vmatprep.subr.mxu0 0.0
          %725 = vmatpush1.msra.mxu0 0.0
          %726 = vmatprep.subr.mxu0 0.0
          %727 = vmatpush1.msra.mxu0 0.0
          %728 = vmatprep.subr.mxu0 0.0
          %729 = vmatpush1.msra.mxu0 0.0
          %730 = vmatprep.subr.mxu0 0.0
          %731 = vmatpush1.msra.mxu0 0.0
          %732 = vmatprep.subr.mxu0 0.0
          %733 = vmatpush1.msra.mxu0 0.0
          %734 = vmatprep.subr.mxu0 0.0
          %735 = vmatpush1.msra.mxu0 0.0
          %736 = vmatprep.subr.mxu0 0.0
          %737 = vmatpush1.msra.mxu0 0.0
          %738 = vmatprep.subr.mxu0 0.0
          %739 = vmatpush1.msra.mxu0 0.0
          %740 = vmatprep.subr.mxu0 0.0
          %741 = vmatpush1.msra.mxu0 0.0
          %742 = vmatprep.subr.mxu0 0.0
          %743 = vmatpush1.msra.mxu0 0.0
          %744 = vmatprep.subr.mxu0 0.0
          %745 = vmatpush1.msra.mxu0 0.0
          %746 = vmatprep.subr.mxu0 0.0
          %747 = vmatpush1.msra.mxu0 0.0
          %748 = vmatprep.subr.mxu0 0.0
          %749 = vmatpush1.msra.mxu0 0.0
          %750 = vmatprep.subr.mxu0 0.0
          %751 = vmatpush1.msra.mxu0 0.0
          %752 = vmatprep.subr.mxu0 0.0
          %753 = vmatpush1.msra.mxu0 0.0
          %754 = vmatprep.mubr.f32.mxu0 0.0
          %755 = vmatmul.mubr.f32.gmra.mrb[0].mxu0 %v666
          %v756 = vpop.f32.mrb[0].mxu0
          %v757 = vadd.f32 %v688, %v756
          %v758 = vpop.f32.mrb[0].mxu0
          %759 = vdwg.mxu0
          %v760 = vld [vmem:[%s363] sm:$0xff]
          %v761 = vadd.f32 %v760, %v757
          %762 = vst [vmem:[%s411] sm:$0xff] %v761
        $region76: #{tpu_custom_call.1} parent=47 // pred_fallthru
          _
        %s763 = sand.u32 %s228, 1
        %s764 = scalar_lea.sflag [#allocation8], %s763
        %s765 = sand.u32 %s228, 1
        %s766 = smul.addr %s765, 8
        %s767 = scalar_lea.vmem [#allocation14], %s766
        // Predicated region
        $region77: #{tpu_custom_call.1} parent=47 // pred_check
          %p768 = pneg %p238
        $region78: #{tpu_custom_call.1} parent=47 // pred_check_branch
          %770 = sbr.rel (%p768) target = $region80
        $region79: #{tpu_custom_call.1} parent=47 // pred_region
          %s772 = ssub.s32 128, 128
          %773 = vsyncadd %s764, %s772
          %s774 = smul.addr %s42, 128
          %s775 = scalar_lea.hbm %s9, %s774
          %s777 = sshll.u32 %s767, 4
          %s778 = int_to_ptr.vmem [resolvable:$true] %s777
          %780 = dma.vmem_to_hbm [thread:$0]  %s778, 128, %s775, %s764
        $region80: #{tpu_custom_call.1} parent=47 // pred_fallthru
          _
      $region48: #{tpu_custom_call.1} parent=5 // pred_fallthru
        _
      %p781 = scmp.le.s32.totalorder 2, %s33
      // Predicated region
      $region81: #{tpu_custom_call.1} parent=5 // pred_check
        %p782 = pneg %p781
      $region82: #{tpu_custom_call.1} parent=5 // pred_check_branch
        %784 = sbr.rel (%p782) target = $region84
      $region83: #{tpu_custom_call.1} parent=5 // pred_region
        %s785 = ssub.s32 %s33, 2
        // Predicated region
        $region85: #{tpu_custom_call.1} parent=83 // pred_check
          %p786 = pneg %p244
        $region86: #{tpu_custom_call.1} parent=83 // pred_check_branch
          %788 = sbr.rel (%p786) target = $region88
        $region87: #{tpu_custom_call.1} parent=83 // pred_region
          %s789 = sand.u32 %s229, 1
          %s790 = scalar_lea.sflag [#allocation8], %s789
          %s791 = sand.u32 %s229, 1
          %s792 = smul.addr %s791, 8
          %s793 = scalar_lea.vmem [#allocation14], %s792
          %794 = dma.done %s790, 128
        $region88: #{tpu_custom_call.1} parent=83 // pred_fallthru
          _
      $region84: #{tpu_custom_call.1} parent=5 // pred_fallthru
        _
    $region6: #{tpu_custom_call.1} parent=1 // loop_footer
      %s37 = sadd.s32 1, %s33
    $region7: #{tpu_custom_call.1} parent=1 // loop_footer_branch
      %32 = sbr.rel target = $region3
    $region8: #{tpu_custom_call.1} parent=1 // loop_exit
      _
    %795 = vsyncpa [#allocation7], 1
    %s796 = scalar_lea.sflag [#allocation7], 1
    %797 = vsyncpa %s796, 1
    %798 = vsyncpa [#allocation10], 1
    %s799 = scalar_lea.sflag [#allocation10], 1
    %800 = vsyncpa %s799, 1
    %801 = vsyncpa [#allocation13], 1
    %802 = vsyncpa [#allocation8], 1
    %s803 = scalar_lea.sflag [#allocation8], 1
    %804 = vsyncpa %s803, 1

</llo_original>
